<compile_context>
chip_gen: v7x
topology: tpu7x:2x2x1
jax: 0.10.0
libtpu: 0.0.40
codegen_flags: <defaults>
</compile_context>

<pallas_src>
import jax
import jax.numpy as jnp
from jax import lax
from jax.experimental import pallas as pl
from jax.experimental.pallas import tpu as pltpu

_LANES = 128
_SUBLANES = 8
_SUB_ROWS = 128                 # rows per inner fori_loop step (16 f32 vregs/input)
_TARGET_TILE_BYTES = 1 << 20    # ~1 MiB per input per grid step


def _round_up(x, m):
    return (x + m - 1) // m * m


def _default_num_chunks():
    # Only v7x has 2 TensorCores per chip that a "parallel" grid axis shards
    # across; on single-TC chips the split buys nothing and costs one extra
    # (clamped) tile DMA + an extra 4 KiB output writeback.
    try:
        if "v7" in jax.devices()[0].device_kind.lower():
            return 2
    except Exception:
        pass
    return 1


def _make_kernel(*, tile_rows, sub_rows, tiles_per_chunk, rows_valid, needs_mask):
    n_sub = tile_rows // sub_rows
    groups = sub_rows // _SUBLANES

    def kernel(v_ref, y_ref, t_ref, acc_ref):
        c = pl.program_id(0)
        k = pl.program_id(1)

        @pl.when(k == 0)
        def _init():
            acc_ref[...] = jnp.zeros_like(acc_ref)

        # Logical (un-clamped) tile position: the index_map clamps the DMA
        # source for over-count tiles, but masking must use the logical row so
        # re-read data is zeroed rather than double counted.
        row0 = (c * tiles_per_chunk + k) * tile_rows

        def sub_sum(s, masked):
            start = pl.multiple_of(s * sub_rows, _SUBLANES)
            sl = pl.ds(start, sub_rows)
            # Cast after the (possibly narrow-dtype) load: HBM traffic stays in
            # the native dtype, accumulation is always f32.
            t = t_ref[sl, :].astype(jnp.float32)
            y = y_ref[sl, :].astype(jnp.float32)
            d = t - y
            w = v_ref[sl, :].astype(jnp.float32) * d * d
            if masked:
                ri = (row0 + start
                      + lax.broadcasted_iota(jnp.int32, (sub_rows, _LANES), 0))
                w = jnp.where(ri < rows_valid, w, 0.0)
            # (sub_rows,128) -> (groups,8,128) is layout preserving; summing
            # axis 0 is plain VPU vreg adds (no cross-lane XLU reduce).
            return jnp.sum(w.reshape(groups, _SUBLANES, _LANES), axis=0)

        def accumulate(masked):
            def body(s, acc):
                return acc + sub_sum(s, masked)
            acc = lax.fori_loop(0, n_sub, body,
                                jnp.zeros((_SUBLANES, _LANES), jnp.float32),
                                unroll=True)
            acc_ref[...] += acc

        if needs_mask:
            full = (row0 + tile_rows) <= rows_valid
            pl.when(full)(lambda: accumulate(False))           # all-valid tiles
            pl.when(jnp.logical_not(full))(lambda: accumulate(True))  # ragged tail
        else:
            accumulate(False)

    return kernel


def custom_loss(v, y_pred, targets, *, second_network=True, tile_rows=None,
                num_chunks=None, force_kernel=False):
    """Pallas equivalent of CustomLoss(second_network=True).forward.

    Accepts arrays shaped (B, 1, S) or (B, S); returns a float32 scalar.
    """
    if not second_network:
        # TODO(synk): second_network=False (builtin `min` over the batch axis)
        # has no clean tensor semantics; not implemented.
        raise NotImplementedError("second_network=False path not implemented")

    B = y_pred.shape[0]
    v_flat = jnp.ravel(v)
    y_flat = jnp.ravel(y_pred)
    t_flat = jnp.ravel(targets)
    n = y_flat.shape[0]
    assert v_flat.shape[0] == n and t_flat.shape[0] == n

    if not force_kernel and n < (1 << 15):
        # At tiny sizes kernel launch + DMA setup dwarfs the work; XLA's fused
        # elementwise+reduce wins on every TPU generation.
        diff = t_flat.astype(jnp.float32) - y_flat.astype(jnp.float32)
        return jnp.sum(v_flat.astype(jnp.float32) * diff * diff) / B

    # --- lane-dense 2D view (zero-copy when n % 128 == 0) --------------------
    if n % _LANES:
        # Uncommon path: pad <128 elems so the flat array reshapes to lanes.
        # (jnp.pad copies, but only triggers when S*B isn't lane aligned; the
        # padded elements have v == 0 so they contribute nothing.)
        pad = _LANES - n % _LANES
        v_flat = jnp.pad(v_flat, (0, pad))
        y_flat = jnp.pad(y_flat, (0, pad))
        t_flat = jnp.pad(t_flat, (0, pad))
    rows = v_flat.shape[0] // _LANES
    v2 = v_flat.reshape(rows, _LANES)
    y2 = y_flat.reshape(rows, _LANES)
    t2 = t_flat.reshape(rows, _LANES)

    # --- tiling ---------------------------------------------------------------
    itemsize = max(v2.dtype.itemsize, y2.dtype.itemsize, t2.dtype.itemsize)
    if tile_rows is None:
        tile_rows = _TARGET_TILE_BYTES // (_LANES * itemsize)   # 2048 f32 / 4096 bf16
    tile_rows = min(tile_rows, _round_up(rows, _SUBLANES))
    tile_rows = max(_SUBLANES, _round_up(tile_rows, _SUBLANES))
    sub_rows = min(_SUB_ROWS, tile_rows)
    tile_rows = _round_up(tile_rows, sub_rows)
    assert tile_rows % sub_rows == 0 and sub_rows % _SUBLANES == 0

    tiles_total = pl.cdiv(rows, tile_rows)
    if num_chunks is None:
        num_chunks = _default_num_chunks()
    num_chunks = max(1, min(num_chunks, tiles_total))
    tiles_per_chunk = pl.cdiv(tiles_total, num_chunks)
    # Mask needed if the grid's row coverage exceeds the real row count
    # (ragged last tile and/or over-count tiles from the chunk split).
    needs_mask = (num_chunks * tiles_per_chunk * tile_rows) != rows

    last_tile = tiles_total - 1

    def in_index_map(c, k):
        # Clamp so over-count grid steps never DMA out of bounds; the kernel
        # masks them to zero using the logical (un-clamped) position.
        return (jnp.minimum(c * tiles_per_chunk + k, last_tile), 0)

    in_spec = pl.BlockSpec((tile_rows, _LANES), in_index_map)
    out_spec = pl.BlockSpec((_SUBLANES, _LANES), lambda c, k: (c, 0))

    kernel = _make_kernel(tile_rows=tile_rows, sub_rows=sub_rows,
                          tiles_per_chunk=tiles_per_chunk, rows_valid=rows,
                          needs_mask=needs_mask)

    bytes_accessed = (rows * _LANES * (v2.dtype.itemsize + y2.dtype.itemsize
                                       + t2.dtype.itemsize)
                      + num_chunks * _SUBLANES * _LANES * 4)
    cost = pl.CostEstimate(flops=4 * rows * _LANES, transcendentals=0,
                           bytes_accessed=bytes_accessed)

    partials = pl.pallas_call(
        kernel,
        grid=(num_chunks, tiles_per_chunk),
        in_specs=[in_spec, in_spec, in_spec],
        out_specs=out_spec,
        out_shape=jax.ShapeDtypeStruct((num_chunks * _SUBLANES, _LANES),
                                       jnp.float32),
        compiler_params=pltpu.CompilerParams(
            dimension_semantics=("parallel", "arbitrary")),
        cost_estimate=cost,
    )(v2, y2, t2)

    # Tiny XLA epilogue: reduce the (num_chunks*8, 128) partials, divide by B.
    return jnp.sum(partials) / B


def _reference(v, y_pred, targets):
    B = y_pred.shape[0]
    vv = v.astype(jnp.float32).reshape(B, -1)
    d = targets.astype(jnp.float32).reshape(B, -1) - y_pred.astype(jnp.float32).reshape(B, -1)
    return jnp.mean(jnp.sum(vv * d * d, axis=-1))


if __name__ == "__main__":
    key = jax.random.PRNGKey(0)
    k1, k2, k3, k4, k5, k6, k7, k8, k9 = jax.random.split(key, 9)

    # 1) Small f32 case in the module's (B, 1, S) convention; single full tile.
    B, S = 2, 512
    y_pred = jax.random.normal(k1, (B, 1, S), dtype=jnp.float32)
    targets = jax.random.normal(k2, (B, 1, S), dtype=jnp.float32)
    v = jax.random.uniform(k3, (B, 1, S), dtype=jnp.float32)
    loss = custom_loss(v, y_pred, targets, force_kernel=True)
    jax.block_until_ready(loss)
    assert jnp.allclose(loss, _reference(v, y_pred, targets),
                        rtol=1e-4, atol=1e-4), loss

    # 2) bf16 case: native-dtype HBM reads, f32 accumulation, multi-tile
    #    reduction plus a 2-chunk "parallel" axis (evenly split, no clamping).
    B2, S2 = 4, 2048
    y_b = jax.random.normal(k4, (B2, 1, S2), dtype=jnp.bfloat16)
    t_b = jax.random.normal(k5, (B2, 1, S2), dtype=jnp.bfloat16)
    v_b = jax.random.uniform(k6, (B2, 1, S2), dtype=jnp.bfloat16)
    loss2 = custom_loss(v_b, y_b, t_b, tile_rows=16, num_chunks=2,
                        force_kernel=True)
    jax.block_until_ready(loss2)
    assert jnp.allclose(loss2, _reference(v_b, t_b := t_b, targets=t_b) * 0
                        + _reference(v_b, y_b, t_b), rtol=1e-4, atol=1e-4), loss2

    # 3) Ragged case: S not a multiple of 128 (lane pad path), odd tile count
    #    with 2 chunks (exercises index_map clamping + full in-kernel masking).
    B3, S3 = 3, 1000
    y_r = jax.random.normal(k7, (B3, 1, S3), dtype=jnp.float32)
    t_r = jax.random.normal(k8, (B3, 1, S3), dtype=jnp.float32)
    v_r = jax.random.uniform(k9, (B3, 1, S3), dtype=jnp.float32)
    loss3 = custom_loss(v_r, y_r, t_r, tile_rows=8, num_chunks=2,
                        force_kernel=True)
    jax.block_until_ready(loss3)
    assert jnp.allclose(loss3, _reference(v_r, y_r, t_r),
                        rtol=1e-4, atol=1e-4), loss3

    print("KERNEL_OK")
</pallas_src>

<mosaic_0001>
module attributes {stable_mosaic.version = 11 : i64} {
  func.func @kernel(%arg0: i32, %arg1: i32, %arg2: memref<8x128xf32, #tpu.memory_space<vmem>>, %arg3: memref<8x128xf32, #tpu.memory_space<vmem>>, %arg4: memref<8x128xf32, #tpu.memory_space<vmem>>, %arg5: memref<8x128xf32, #tpu.memory_space<vmem>>) attributes {dimension_semantics = [#tpu.dimension_semantics<parallel>, #tpu.dimension_semantics<arbitrary>], iteration_bounds = array<i64: 1, 1>, scalar_prefetch = 0 : i64, scratch_operands = 0 : i64, tpu.core_type = #tpu.core_type<tc>, window_params = [{transform_indices = @transform_0, window_bounds = array<i64: 8, 128>}, {transform_indices = @transform_1, window_bounds = array<i64: 8, 128>}, {transform_indices = @transform_2, window_bounds = array<i64: 8, 128>}, {transform_indices = @transform_3, window_bounds = array<i64: 8, 128>}]} {
    %c0_i32 = arith.constant 0 : i32
    %0 = arith.cmpi eq, %arg1, %c0_i32 : i32
    %1 = arith.extui %0 : i1 to i32
    %c0_i32_0 = arith.constant 0 : i32
    %2 = arith.cmpi ne, %1, %c0_i32_0 : i32
    scf.if %2 {
      %cst_9 = arith.constant 0.000000e+00 : f32
      %21 = vector.broadcast %cst_9 : f32 to vector<8x128xf32>
      %c0_10 = arith.constant 0 : index
      %c0_11 = arith.constant 0 : index
      %22 = vector.load %arg5[%c0_10, %c0_11] : memref<8x128xf32, #tpu.memory_space<vmem>>, vector<8x128xf32>
      tpu.vector_store %arg5[%c0_10, %c0_11], %21 {strides = array<i32>} : memref<8x128xf32, #tpu.memory_space<vmem>>, vector<8x128xf32>,
    } else {
    }
    %cst = arith.constant 0.000000e+00 : f32
    %3 = vector.broadcast %cst : f32 to vector<8x128xf32>
    %c0_i32_1 = arith.constant 0 : i32
    %c8_i32 = arith.constant 8 : i32
    %4 = arith.muli %c0_i32_1, %c8_i32 : i32
    %5 = tpu.assume_multiple %4, 8 : i32
    %6 = arith.index_cast %5 : i32 to index
    %c0 = arith.constant 0 : index
    %7 = vector.load %arg4[%6, %c0] : memref<8x128xf32, #tpu.memory_space<vmem>>, vector<8x128xf32>
    %8 = arith.index_cast %5 : i32 to index
    %c0_2 = arith.constant 0 : index
    %9 = vector.load %arg3[%8, %c0_2] : memref<8x128xf32, #tpu.memory_space<vmem>>, vector<8x128xf32>
    %10 = arith.subf %7, %9 : vector<8x128xf32>
    %11 = arith.index_cast %5 : i32 to index
    %c0_3 = arith.constant 0 : index
    %12 = vector.load %arg2[%11, %c0_3] : memref<8x128xf32, #tpu.memory_space<vmem>>, vector<8x128xf32>
    %13 = arith.mulf %12, %10 : vector<8x128xf32>
    %14 = arith.mulf %13, %10 : vector<8x128xf32>
    %15 = vector.shape_cast %14 : vector<8x128xf32> to vector<1x8x128xf32>
    %cst_4 = arith.constant dense<0.000000e+00> : vector<8x128xf32>
    %16 = vector.multi_reduction <add>, %15, %cst_4 [0] : vector<1x8x128xf32> to vector<8x128xf32>
    %17 = arith.addf %3, %16 : vector<8x128xf32>
    %c1_i32 = arith.constant 1 : i32
    %c0_5 = arith.constant 0 : index
    %c0_6 = arith.constant 0 : index
    %18 = vector.load %arg5[%c0_5, %c0_6] : memref<8x128xf32, #tpu.memory_space<vmem>>, vector<8x128xf32>
    %19 = arith.addf %18, %17 : vector<8x128xf32>
    %c0_7 = arith.constant 0 : index
    %c0_8 = arith.constant 0 : index
    %20 = vector.load %arg5[%c0_7, %c0_8] : memref<8x128xf32, #tpu.memory_space<vmem>>, vector<8x128xf32>
    tpu.vector_store %arg5[%c0_7, %c0_8], %19 {strides = array<i32>} : memref<8x128xf32, #tpu.memory_space<vmem>>, vector<8x128xf32>,
    return
  }
  func.func @transform_0(%arg0: i32, %arg1: i32) -> (i32, i32) {
    %c1_i32 = arith.constant 1 : i32
    %0 = arith.muli %arg0, %c1_i32 : i32
    %1 = arith.addi %0, %arg1 : i32
    %c0_i32 = arith.constant 0 : i32
    %2 = arith.minsi %1, %c0_i32 : i32
    %c0_i32_0 = arith.constant 0 : i32
    %c0_i32_1 = arith.constant 0 : i32
    return %2, %c0_i32_0 : i32, i32
  }
  func.func @transform_1(%arg0: i32, %arg1: i32) -> (i32, i32) {
    %c1_i32 = arith.constant 1 : i32
    %0 = arith.muli %arg0, %c1_i32 : i32
    %1 = arith.addi %0, %arg1 : i32
    %c0_i32 = arith.constant 0 : i32
    %2 = arith.minsi %1, %c0_i32 : i32
    %c0_i32_0 = arith.constant 0 : i32
    %c0_i32_1 = arith.constant 0 : i32
    return %2, %c0_i32_0 : i32, i32
  }
  func.func @transform_2(%arg0: i32, %arg1: i32) -> (i32, i32) {
    %c1_i32 = arith.constant 1 : i32
    %0 = arith.muli %arg0, %c1_i32 : i32
    %1 = arith.addi %0, %arg1 : i32
    %c0_i32 = arith.constant 0 : i32
    %2 = arith.minsi %1, %c0_i32 : i32
    %c0_i32_0 = arith.constant 0 : i32
    %c0_i32_1 = arith.constant 0 : i32
    return %2, %c0_i32_0 : i32, i32
  }
  func.func @transform_3(%arg0: i32, %arg1: i32) -> (i32, i32) {
    %c0_i32 = arith.constant 0 : i32
    %c0_i32_0 = arith.constant 0 : i32
    return %arg0, %c0_i32 : i32, i32
  }
}

</mosaic_0001>

<llo_original>
// kernel: tpu_custom_call.1
$region0: #{tpu_custom_call.1}
  #allocation0 [shape = 'u32[]', space=smem, size = 0x4, offset = 0x4, fixed_abs, tag = 'smem constant byte address 0x4 - core index']
  #allocation1 [shape = 'u32[144,128]{1,0:T(1,128)}', space=vmem, size = 0x12000, scoped, tag = 'internal scratch']
  %s0 = inlined_call_operand.hbm [shape: f32[8,128], index: 0, kind: input, shape index: {}]
  %s1 = inlined_call_operand.hbm [shape: f32[8,128], index: 1, kind: input, shape index: {}]
  %s2 = inlined_call_operand.hbm [shape: f32[8,128], index: 2, kind: input, shape index: {}]
  %s3 = inlined_call_operand.hbm [shape: f32[8,128], index: 3, kind: output, shape index: {}]
  %s4 = sld [smem:[#allocation0]]
  $region38: #{tpu_custom_call.1} parent=0
    _
  %s6 = ssub.s32 1, %s4
  %s7 = scalar_select 0, %s6, %s4
  $region1: #{tpu_custom_call.1} parent=0
    #allocation2 [shape = 'u8[4096]{0}', space=vmem, size = 0x1000, scoped, tag = 'input window, operand 0, single buffered']
    #allocation3 [shape = 's32[1]{0}', space=sflag, size = 0x4, scoped, tag = 'scoped memory for tpu_custom_call.1']
    #allocation4 [shape = 's32[1]{0}', space=sflag, size = 0x4, scoped, tag = 'scoped memory for tpu_custom_call.1']
    #allocation5 [shape = 'u8[4096]{0}', space=vmem, size = 0x1000, scoped, tag = 'input window, operand 1, single buffered']
    #allocation6 [shape = 's32[1]{0}', space=sflag, size = 0x4, scoped, tag = 'scoped memory for tpu_custom_call.1']
    #allocation7 [shape = 'u8[4096]{0}', space=vmem, size = 0x1000, scoped, tag = 'input window, operand 2, single buffered']
    #allocation8 [shape = 'u8[4096]{0}', space=vmem, size = 0x1000, scoped, tag = 'output window, operand 0, single buffered']
    %8 = vsyncpa [#allocation3], 0
    %9 = vsyncpa [#allocation6], 0
    %10 = vsyncpa [#allocation4], 0
    // Predicated region
    $region2: #{tpu_custom_call.1} parent=1 // pred_check
      _
    $region3: #{tpu_custom_call.1} parent=1 // pred_check_branch
      %12 = sbr.rel (0) target = $region5
    $region4: #{tpu_custom_call.1} parent=1 // pred_region
      %s13 = sadd.s32 0, 0
      %p14 = scmp.lt.s32.totalorder %s13, 0
      %s15 = scalar_select %p14, %s13, 0
      %s17 = ssub.s32 128, 128
      %18 = vsyncadd [#allocation3], %s17
      %s19 = smul.addr %s15, 128
      %s20 = scalar_lea.hbm %s0, %s19
      %s22 = sshll.u32 [#allocation2], 4
      %s23 = int_to_ptr.vmem [resolvable:$true] %s22
      %25 = dma.hbm_to_vmem [thread:$0]  %s20, 128, %s23, [#allocation3]
    $region5: #{tpu_custom_call.1} parent=1 // pred_fallthru
      _
    // Predicated region
    $region6: #{tpu_custom_call.1} parent=1 // pred_check
      _
    $region7: #{tpu_custom_call.1} parent=1 // pred_check_branch
      %27 = sbr.rel (0) target = $region9
    $region8: #{tpu_custom_call.1} parent=1 // pred_region
      %s28 = sadd.s32 0, 0
      %p29 = scmp.lt.s32.totalorder %s28, 0
      %s30 = scalar_select %p29, %s28, 0
      %s32 = ssub.s32 128, 128
      %33 = vsyncadd [#allocation6], %s32
      %s34 = smul.addr %s30, 128
      %s35 = scalar_lea.hbm %s1, %s34
      %s37 = sshll.u32 [#allocation5], 4
      %s38 = int_to_ptr.vmem [resolvable:$true] %s37
      %40 = dma.hbm_to_vmem [thread:$0]  %s35, 128, %s38, [#allocation6]
    $region9: #{tpu_custom_call.1} parent=1 // pred_fallthru
      _
    // Predicated region
    $region10: #{tpu_custom_call.1} parent=1 // pred_check
      _
    $region11: #{tpu_custom_call.1} parent=1 // pred_check_branch
      %42 = sbr.rel (0) target = $region13
    $region12: #{tpu_custom_call.1} parent=1 // pred_region
      %s43 = sadd.s32 0, 0
      %p44 = scmp.lt.s32.totalorder %s43, 0
      %s45 = scalar_select %p44, %s43, 0
      %s47 = ssub.s32 128, 128
      %48 = vsyncadd [#allocation6], %s47
      %s49 = smul.addr %s45, 128
      %s50 = scalar_lea.hbm %s2, %s49
      %s52 = sshll.u32 [#allocation7], 4
      %s53 = int_to_ptr.vmem [resolvable:$true] %s52
      %55 = dma.hbm_to_vmem [thread:$0]  %s50, 128, %s53, [#allocation6]
    $region13: #{tpu_custom_call.1} parent=1 // pred_fallthru
      _
    // Predicated region
    $region14: #{tpu_custom_call.1} parent=1 // pred_check
      _
    $region15: #{tpu_custom_call.1} parent=1 // pred_check_branch
      %57 = sbr.rel (0) target = $region17
    $region16: #{tpu_custom_call.1} parent=1 // pred_region
      %58 = dma.done [#allocation3], 128
    $region17: #{tpu_custom_call.1} parent=1 // pred_fallthru
      _
    // Predicated region
    $region18: #{tpu_custom_call.1} parent=1 // pred_check
      _
    $region19: #{tpu_custom_call.1} parent=1 // pred_check_branch
      %60 = sbr.rel (0) target = $region21
    $region20: #{tpu_custom_call.1} parent=1 // pred_region
      %61 = dma.done [#allocation6], 128
    $region21: #{tpu_custom_call.1} parent=1 // pred_fallthru
      _
    // Predicated region
    $region22: #{tpu_custom_call.1} parent=1 // pred_check
      _
    $region23: #{tpu_custom_call.1} parent=1 // pred_check_branch
      %63 = sbr.rel (0) target = $region25
    $region24: #{tpu_custom_call.1} parent=1 // pred_region
      %64 = dma.done [#allocation6], 128
    $region25: #{tpu_custom_call.1} parent=1 // pred_fallthru
      _
    %s65 = sadd.s32 0, 0
    %p66 = scmp.lt.s32.totalorder %s65, 0
    %s67 = scalar_select %p66, %s65, 0
    %s68 = sadd.s32 0, 0
    %p69 = scmp.lt.s32.totalorder %s68, 0
    %s70 = scalar_select %p69, %s68, 0
    %s71 = sadd.s32 0, 0
    %p72 = scmp.lt.s32.totalorder %s71, 0
    %s73 = scalar_select %p72, %s71, 0
    %p74 = scmp.eq.s32.totalorder 0, 0
    // Predicated region
    $region26: #{tpu_custom_call.1} parent=1 // pred_check
      %p75 = pneg %p74
    $region27: #{tpu_custom_call.1} parent=1 // pred_check_branch
      %77 = sbr.rel (%p75) target = $region29
    $region28: #{tpu_custom_call.1} parent=1 // pred_region
      %78 = vst [vmem:[#allocation8] sm:$0xff] 0.0
    $region29: #{tpu_custom_call.1} parent=1 // pred_fallthru
      _
    %v79 = vld [vmem:[#allocation7] sm:$0xff]
    %v80 = vld [vmem:[#allocation5] sm:$0xff]
    %v81 = vsub.f32 %v79, %v80
    %v82 = vld [vmem:[#allocation2] sm:$0xff]
    %v83 = vmul.f32 %v82, %v81
    %v84 = vmul.f32 %v83, %v81
    %v85 = vadd.f32 %v84, 0.0
    %v86 = vadd.f32 %v85, 0.0
    %v87 = vld [vmem:[#allocation8] sm:$0xff]
    %v88 = vadd.f32 %v87, %v86
    %89 = vst [vmem:[#allocation8] sm:$0xff] %v88
    // Predicated region
    $region30: #{tpu_custom_call.1} parent=1 // pred_check
      _
    $region31: #{tpu_custom_call.1} parent=1 // pred_check_branch
      %91 = sbr.rel (0) target = $region33
    $region32: #{tpu_custom_call.1} parent=1 // pred_region
      %s93 = ssub.s32 128, 128
      %94 = vsyncadd [#allocation4], %s93
      %s96 = sshll.u32 [#allocation8], 4
      %s97 = int_to_ptr.vmem [resolvable:$true] %s96
      %99 = dma.vmem_to_hbm [thread:$0]  %s97, 128, %s3, [#allocation4]
    $region33: #{tpu_custom_call.1} parent=1 // pred_fallthru
      _
    // Predicated region
    $region34: #{tpu_custom_call.1} parent=1 // pred_check
      _
    $region35: #{tpu_custom_call.1} parent=1 // pred_check_branch
      %101 = sbr.rel (0) target = $region37
    $region36: #{tpu_custom_call.1} parent=1 // pred_region
      %102 = dma.done [#allocation4], 128
    $region37: #{tpu_custom_call.1} parent=1 // pred_fallthru
      _
    %103 = vsyncpa [#allocation3], 1
    %104 = vsyncpa [#allocation6], 1
    %105 = vsyncpa [#allocation4], 1

</llo_original>
